<compile_context>
chip_gen: v7x
topology: tpu7x:2x2x1
jax: 0.10.0
libtpu: 0.0.40
codegen_flags: <defaults>
</compile_context>

<pallas_src>
import functools

import jax
import jax.numpy as jnp
from jax import lax
from jax.experimental import pallas as pl
from jax.experimental.pallas import tpu as pltpu

LOW_CONFIDENCE_SCALE = 1.0     # == 1.0, folded into the fused contribution
HIGH_CONFIDENCE_SCALE = 0.5
TARGET_CONFIDENCE = 0.8        # unused in the reference forward pass

_LANES = 128
_SUBLANES = 8
_CHUNK_ROWS = 256              # in-tile streaming chunk (multiple of 32)
_TARGET_TILE_BYTES = 4 * 1024 * 1024   # per input buffer; v5e-safe when 2x buffered


def _round_up(x: int, m: int) -> int:
    return ((x + m - 1) // m) * m


def _num_tensorcores() -> int:
    """Best-effort TC-per-chip detection: 2 on v7x, else 1 (v5e/v6e)."""
    try:
        kind = jax.devices()[0].device_kind.lower()
    except Exception:
        return 1
    return 2 if ("v7" in kind or "7x" in kind) else 1


def _confidence_penalty_kernel(x_ref, acc_ref, *, total_rows, tile_rows,
                               chunk_rows, tiles_per_core):
    c = pl.program_id(0)   # "core" axis   (parallel)
    i = pl.program_id(1)   # reduction axis (arbitrary)

    # Per-core output block is resident across the reduction axis and doubles
    # as the vector accumulator.
    @pl.when(i == 0)
    def _():
        acc_ref[...] = jnp.zeros_like(acc_ref)

    num_chunks = tile_rows // chunk_rows
    block_idx = c * tiles_per_core + i          # UN-clamped (phantom-aware)
    tile_start = block_idx * tile_rows
    is_full = tile_start + tile_rows <= total_rows

    def chunk_contrib(x_f32):
        # Fused penalty: relu(-x) * 1.0 + 0.5 * relu(x - 1), folded to (8,128)
        # with tile-aligned sublane-group adds (pure VPU, no XLU).
        contrib = (jnp.maximum(-x_f32, 0.0)
                   + jnp.float32(HIGH_CONFIDENCE_SCALE)
                   * jnp.maximum(x_f32 - 1.0, 0.0))
        return jnp.sum(
            contrib.reshape(chunk_rows // _SUBLANES, _SUBLANES, _LANES), axis=0)

    @pl.when(is_full)
    def _():
        # Steady-state path: no masking at all.
        def body(k, acc):
            r0 = pl.multiple_of(k * chunk_rows, chunk_rows)
            x = x_ref[pl.ds(r0, chunk_rows), :].astype(jnp.float32)
            return acc + chunk_contrib(x)
        acc_ref[...] += lax.fori_loop(
            0, num_chunks, body, jnp.zeros((_SUBLANES, _LANES), jnp.float32))

    @pl.when(jnp.logical_not(is_full))
    def _():
        # Tail / phantom tile: mask rows >= total_rows (uses the UN-clamped
        # tile_start, so phantom tiles past num_tiles contribute exactly 0).
        def body(k, acc):
            r0 = pl.multiple_of(k * chunk_rows, chunk_rows)
            row = (tile_start + r0
                   + lax.broadcasted_iota(jnp.int32, (chunk_rows, _LANES), 0))
            x = x_ref[pl.ds(r0, chunk_rows), :].astype(jnp.float32)
            x = jnp.where(row < total_rows, x, 0.0)
            return acc + chunk_contrib(x)
        acc_ref[...] += lax.fori_loop(
            0, num_chunks, body, jnp.zeros((_SUBLANES, _LANES), jnp.float32))


def confidence_penalty(confidences: jax.Array, *,
                       target_tile_bytes: int = _TARGET_TILE_BYTES,
                       num_cores: int | None = None) -> jax.Array:
    """Scalar confidence penalty matching the PyTorch module's forward."""
    n_elements = confidences.size
    flat = jnp.ravel(confidences)            # contiguous -> zero-copy reshape
    itemsize = flat.dtype.itemsize

    n_main = (n_elements // _LANES) * _LANES
    rem = n_elements - n_main

    # Ragged (<128-element) remainder: tiny XLA reduction instead of a
    # full-array pad copy.
    rem_sum = jnp.float32(0.0)
    if rem:
        tail = flat[n_main:].astype(jnp.float32)
        rem_sum = jnp.sum(jnp.maximum(-tail, 0.0)
                          + jnp.float32(HIGH_CONFIDENCE_SCALE)
                          * jnp.maximum(tail - 1.0, 0.0))

    if n_main == 0:   # fewer than 128 elements: nothing to stream
        return rem_sum / jnp.float32(n_elements)

    # Common case (rem == 0): no slice, no copy — pure streaming of the input.
    main = flat if rem == 0 else flat[:n_main]
    x2d = main.reshape(-1, _LANES)
    total_rows = x2d.shape[0]

    # Dtype-aware tiling: sublane multiple 8 (f32) / 16 (bf16) / 32 (int8),
    # tile sized by BYTES so bf16 gets 2x the rows of f32.
    sub_mult = 32 // itemsize
    target_rows = target_tile_bytes // (_LANES * itemsize)
    tile_rows = min(target_rows, _round_up(total_rows, sub_mult))
    if tile_rows > _CHUNK_ROWS:
        tile_rows = _round_up(tile_rows, _CHUNK_ROWS)
        chunk_rows = _CHUNK_ROWS
    else:
        chunk_rows = tile_rows
    num_tiles = pl.cdiv(total_rows, tile_rows)

    if num_cores is None:
        num_cores = _num_tensorcores()
    if num_tiles < 2:
        num_cores = 1                      # no phantom-tile traffic
    num_cores = min(num_cores, num_tiles)
    tiles_per_core = pl.cdiv(num_tiles, num_cores)

    kernel = functools.partial(
        _confidence_penalty_kernel,
        total_rows=total_rows,
        tile_rows=tile_rows,
        chunk_rows=chunk_rows,
        tiles_per_core=tiles_per_core,
    )

    def in_index_map(c, i):
        # Clamp so phantom tiles never DMA past the array; the kernel's
        # (un-clamped) row mask zeroes their contribution.
        return (jnp.minimum(c * tiles_per_core + i, num_tiles - 1), 0)

    out_bytes = num_cores * _SUBLANES * _LANES * 4
    cost = pl.CostEstimate(flops=6 * n_main, transcendentals=0,
                           bytes_accessed=n_main * itemsize + out_bytes)

    partials = pl.pallas_call(
        kernel,
        out_shape=jax.ShapeDtypeStruct(
            (num_cores * _SUBLANES, _LANES), jnp.float32),
        grid_spec=pltpu.PrefetchScalarGridSpec(
            num_scalar_prefetch=0,
            grid=(num_cores, tiles_per_core),
            in_specs=[pl.BlockSpec((tile_rows, _LANES), in_index_map)],
            out_specs=pl.BlockSpec((_SUBLANES, _LANES), lambda c, i: (c, 0)),
        ),
        compiler_params=pltpu.CompilerParams(
            dimension_semantics=("parallel", "arbitrary")),
        cost_estimate=cost,
    )(x2d)

    # Tiny finalize in XLA: sum the per-core (8,128) partials + ragged
    # remainder, divide by the ORIGINAL element count.
    return (jnp.sum(partials) + rem_sum) / jnp.float32(n_elements)


def confidence_penalty_ref(confidences: jax.Array) -> jax.Array:
    x = confidences.astype(jnp.float32)
    low = jnp.mean(jnp.maximum(-x, 0.0)) * LOW_CONFIDENCE_SCALE
    high = jnp.mean(jnp.maximum(x - 1.0, 0.0)) * HIGH_CONFIDENCE_SCALE
    return low + high


if __name__ == "__main__":
    key = jax.random.PRNGKey(0)
    k1, k2, k3, k4, k5 = jax.random.split(key, 5)

    # Primary shape (N, C, H, W); values span [-0.5, 1.5] so both terms fire.
    x = jax.random.uniform(k1, (2, 4, 16, 16), dtype=jnp.float32,
                           minval=-0.5, maxval=1.5)
    out = jax.block_until_ready(confidence_penalty(x))
    ref = jax.block_until_ready(confidence_penalty_ref(x))
    assert out.shape == (), f"expected scalar, got {out.shape}"
    assert jnp.allclose(out, ref, atol=1e-6, rtol=1e-5), (out, ref)

    # Ragged element count (not a multiple of 128): exercises the no-pad
    # remainder epilogue and the masked tail tile.
    x_ragged = jax.random.uniform(k2, (3, 7, 11), dtype=jnp.float32,
                                  minval=-0.5, maxval=1.5)
    out_r = jax.block_until_ready(confidence_penalty(x_ragged))
    ref_r = confidence_penalty_ref(x_ragged)
    assert jnp.allclose(out_r, ref_r, atol=1e-6, rtol=1e-5), (out_r, ref_r)

    # bf16 input: native-dtype streaming, dtype-aware sublane rounding and the
    # chunked in-tile fori_loop reduction (16 x 256-row chunks, unmasked path).
    x_big = jax.random.uniform(k3, (4, 8, 128, 128), dtype=jnp.float32,
                               minval=-0.5, maxval=1.5).astype(jnp.bfloat16)
    out_b = jax.block_until_ready(confidence_penalty(x_big))
    ref_b = confidence_penalty_ref(x_big)
    assert jnp.allclose(out_b, ref_b, atol=1e-6, rtol=1e-5), (out_b, ref_b)

    # Multi-tile accumulation + partial tail tile at a small shape
    # (shrunken tile target to keep the test tiny).
    x_multi = jax.random.uniform(k4, (2, 3, 17, 128), dtype=jnp.float32,
                                 minval=-0.5, maxval=1.5)
    out_m = jax.block_until_ready(
        confidence_penalty(x_multi, target_tile_bytes=16 * 1024))
    ref_m = confidence_penalty_ref(x_multi)
    assert jnp.allclose(out_m, ref_m, atol=1e-6, rtol=1e-5), (out_m, ref_m)

    # Explicit 2-core split with an odd tile count: exercises the fully-masked
    # phantom tile; on 1-TC chips this is just a serial split.
    x_core = jax.random.uniform(k5, (10, 8, 128), dtype=jnp.float32,
                                minval=-0.5, maxval=1.5)
    out_c = jax.block_until_ready(
        confidence_penalty(x_core, target_tile_bytes=16 * 1024, num_cores=2))
    ref_c = confidence_penalty_ref(x_core)
    assert jnp.allclose(out_c, ref_c, atol=1e-6, rtol=1e-5), (out_c, ref_c)

    print("KERNEL_OK")
</pallas_src>

<mosaic_0001>
module attributes {stable_mosaic.version = 11 : i64} {
  func.func @_confidence_penalty_kernel(%arg0: i32, %arg1: i32, %arg2: memref<16x128xf32, #tpu.memory_space<vmem>>, %arg3: memref<8x128xf32, #tpu.memory_space<vmem>>) attributes {dimension_semantics = [#tpu.dimension_semantics<parallel>, #tpu.dimension_semantics<arbitrary>], iteration_bounds = array<i64: 1, 1>, scalar_prefetch = 0 : i64, scratch_operands = 0 : i64, tpu.core_type = #tpu.core_type<tc>, window_params = [{transform_indices = @transform_0, window_bounds = array<i64: 16, 128>}, {transform_indices = @transform_1, window_bounds = array<i64: 8, 128>}]} {
    %c0_i32 = arith.constant 0 : i32
    %0 = arith.cmpi eq, %arg1, %c0_i32 : i32
    %1 = arith.extui %0 : i1 to i32
    %c0_i32_0 = arith.constant 0 : i32
    %2 = arith.cmpi ne, %1, %c0_i32_0 : i32
    scf.if %2 {
      %cst = arith.constant 0.000000e+00 : f32
      %13 = vector.broadcast %cst : f32 to vector<8x128xf32>
      %c0 = arith.constant 0 : index
      %c0_5 = arith.constant 0 : index
      %14 = vector.load %arg3[%c0, %c0_5] : memref<8x128xf32, #tpu.memory_space<vmem>>, vector<8x128xf32>
      tpu.vector_store %arg3[%c0, %c0_5], %13 {strides = array<i32>} : memref<8x128xf32, #tpu.memory_space<vmem>>, vector<8x128xf32>,
    } else {
    }
    %c1_i32 = arith.constant 1 : i32
    %3 = arith.muli %arg0, %c1_i32 : i32
    %4 = arith.addi %3, %arg1 : i32
    %c16_i32 = arith.constant 16 : i32
    %5 = arith.muli %4, %c16_i32 : i32
    %c16_i32_1 = arith.constant 16 : i32
    %6 = arith.addi %5, %c16_i32_1 : i32
    %c16_i32_2 = arith.constant 16 : i32
    %7 = arith.cmpi sle, %6, %c16_i32_2 : i32
    %8 = arith.extui %7 : i1 to i32
    %c0_i32_3 = arith.constant 0 : i32
    %9 = arith.cmpi ne, %8, %c0_i32_3 : i32
    scf.if %9 {
      %c0 = arith.constant 0 : index
      %c0_5 = arith.constant 0 : index
      %13 = vector.load %arg3[%c0, %c0_5] : memref<8x128xf32, #tpu.memory_space<vmem>>, vector<8x128xf32>
      %cst = arith.constant 0.000000e+00 : f32
      %14 = vector.broadcast %cst : f32 to vector<8x128xf32>
      %c0_i32_6 = arith.constant 0 : i32
      %c16_i32_7 = arith.constant 16 : i32
      %15 = arith.muli %c0_i32_6, %c16_i32_7 : i32
      %16 = tpu.assume_multiple %15, 16 : i32
      %17 = arith.index_cast %16 : i32 to index
      %c0_8 = arith.constant 0 : index
      %18 = vector.load %arg2[%17, %c0_8] : memref<16x128xf32, #tpu.memory_space<vmem>>, vector<16x128xf32>
      %cst_9 = arith.constant 0.000000e+00 : f32
      %19 = vector.broadcast %cst_9 : f32 to vector<16x128xf32>
      %20 = arith.subf %19, %18 : vector<16x128xf32>
      %cst_10 = arith.constant 0.000000e+00 : f32
      %21 = vector.broadcast %cst_10 : f32 to vector<16x128xf32>
      %22 = arith.maximumf %20, %21 : vector<16x128xf32>
      %cst_11 = arith.constant 1.000000e+00 : f32
      %23 = vector.broadcast %cst_11 : f32 to vector<16x128xf32>
      %24 = arith.subf %18, %23 : vector<16x128xf32>
      %cst_12 = arith.constant 0.000000e+00 : f32
      %25 = vector.broadcast %cst_12 : f32 to vector<16x128xf32>
      %26 = arith.maximumf %24, %25 : vector<16x128xf32>
      %cst_13 = arith.constant 5.000000e-01 : f32
      %27 = vector.broadcast %cst_13 : f32 to vector<16x128xf32>
      %28 = arith.mulf %27, %26 : vector<16x128xf32>
      %29 = arith.addf %22, %28 : vector<16x128xf32>
      %30 = vector.shape_cast %29 : vector<16x128xf32> to vector<2x8x128xf32>
      %cst_14 = arith.constant dense<0.000000e+00> : vector<8x128xf32>
      %31 = vector.multi_reduction <add>, %30, %cst_14 [0] : vector<2x8x128xf32> to vector<8x128xf32>
      %32 = arith.addf %14, %31 : vector<8x128xf32>
      %c1_i32_15 = arith.constant 1 : i32
      %33 = arith.addf %13, %32 : vector<8x128xf32>
      %c0_16 = arith.constant 0 : index
      %c0_17 = arith.constant 0 : index
      %34 = vector.load %arg3[%c0_16, %c0_17] : memref<8x128xf32, #tpu.memory_space<vmem>>, vector<8x128xf32>
      tpu.vector_store %arg3[%c0_16, %c0_17], %33 {strides = array<i32>} : memref<8x128xf32, #tpu.memory_space<vmem>>, vector<8x128xf32>,
    } else {
    }
    %true = arith.constant true
    %10 = arith.xori %7, %true : i1
    %11 = arith.extui %10 : i1 to i32
    %c0_i32_4 = arith.constant 0 : i32
    %12 = arith.cmpi ne, %11, %c0_i32_4 : i32
    scf.if %12 {
      %c0 = arith.constant 0 : index
      %c0_5 = arith.constant 0 : index
      %13 = vector.load %arg3[%c0, %c0_5] : memref<8x128xf32, #tpu.memory_space<vmem>>, vector<8x128xf32>
      %cst = arith.constant 0.000000e+00 : f32
      %14 = vector.broadcast %cst : f32 to vector<8x128xf32>
      %c0_i32_6 = arith.constant 0 : i32
      %c16_i32_7 = arith.constant 16 : i32
      %15 = arith.muli %c0_i32_6, %c16_i32_7 : i32
      %16 = tpu.assume_multiple %15, 16 : i32
      %17 = arith.addi %5, %16 : i32
      %18 = tpu.iota {dimensions = array<i32: 0>} : vector<16x128xi32>
      %19 = vector.broadcast %17 : i32 to vector<16x128xi32>
      %20 = arith.addi %19, %18 : vector<16x128xi32>
      %21 = arith.index_cast %16 : i32 to index
      %c0_8 = arith.constant 0 : index
      %22 = vector.load %arg2[%21, %c0_8] : memref<16x128xf32, #tpu.memory_space<vmem>>, vector<16x128xf32>
      %c16_i32_9 = arith.constant 16 : i32
      %23 = vector.broadcast %c16_i32_9 : i32 to vector<16x128xi32>
      %24 = arith.cmpi slt, %20, %23 : vector<16x128xi32>
      %cst_10 = arith.constant 0.000000e+00 : f32
      %25 = vector.broadcast %cst_10 : f32 to vector<16x128xf32>
      %26 = arith.select %24, %22, %25 : vector<16x128xi1>, vector<16x128xf32>
      %cst_11 = arith.constant 0.000000e+00 : f32
      %27 = vector.broadcast %cst_11 : f32 to vector<16x128xf32>
      %28 = arith.subf %27, %26 : vector<16x128xf32>
      %cst_12 = arith.constant 0.000000e+00 : f32
      %29 = vector.broadcast %cst_12 : f32 to vector<16x128xf32>
      %30 = arith.maximumf %28, %29 : vector<16x128xf32>
      %cst_13 = arith.constant 1.000000e+00 : f32
      %31 = vector.broadcast %cst_13 : f32 to vector<16x128xf32>
      %32 = arith.subf %26, %31 : vector<16x128xf32>
      %cst_14 = arith.constant 0.000000e+00 : f32
      %33 = vector.broadcast %cst_14 : f32 to vector<16x128xf32>
      %34 = arith.maximumf %32, %33 : vector<16x128xf32>
      %cst_15 = arith.constant 5.000000e-01 : f32
      %35 = vector.broadcast %cst_15 : f32 to vector<16x128xf32>
      %36 = arith.mulf %35, %34 : vector<16x128xf32>
      %37 = arith.addf %30, %36 : vector<16x128xf32>
      %38 = vector.shape_cast %37 : vector<16x128xf32> to vector<2x8x128xf32>
      %cst_16 = arith.constant dense<0.000000e+00> : vector<8x128xf32>
      %39 = vector.multi_reduction <add>, %38, %cst_16 [0] : vector<2x8x128xf32> to vector<8x128xf32>
      %40 = arith.addf %14, %39 : vector<8x128xf32>
      %c1_i32_17 = arith.constant 1 : i32
      %41 = arith.addf %13, %40 : vector<8x128xf32>
      %c0_18 = arith.constant 0 : index
      %c0_19 = arith.constant 0 : index
      %42 = vector.load %arg3[%c0_18, %c0_19] : memref<8x128xf32, #tpu.memory_space<vmem>>, vector<8x128xf32>
      tpu.vector_store %arg3[%c0_18, %c0_19], %41 {strides = array<i32>} : memref<8x128xf32, #tpu.memory_space<vmem>>, vector<8x128xf32>,
    } else {
    }
    return
  }
  func.func @transform_0(%arg0: i32, %arg1: i32) -> (i32, i32) {
    %c1_i32 = arith.constant 1 : i32
    %0 = arith.muli %arg0, %c1_i32 : i32
    %1 = arith.addi %0, %arg1 : i32
    %c0_i32 = arith.constant 0 : i32
    %2 = arith.minsi %1, %c0_i32 : i32
    %c0_i32_0 = arith.constant 0 : i32
    %c0_i32_1 = arith.constant 0 : i32
    return %2, %c0_i32_0 : i32, i32
  }
  func.func @transform_1(%arg0: i32, %arg1: i32) -> (i32, i32) {
    %c0_i32 = arith.constant 0 : i32
    %c0_i32_0 = arith.constant 0 : i32
    return %arg0, %c0_i32 : i32, i32
  }
}

</mosaic_0001>

<llo_original>
// kernel: tpu_custom_call.1
$region0: #{tpu_custom_call.1}
  #allocation0 [shape = 'u32[]', space=smem, size = 0x4, offset = 0x4, fixed_abs, tag = 'smem constant byte address 0x4 - core index']
  #allocation1 [shape = 'u32[144,128]{1,0:T(1,128)}', space=vmem, size = 0x12000, scoped, tag = 'internal scratch']
  %s0 = inlined_call_operand.hbm [shape: f32[16,128], index: 0, kind: input, shape index: {}]
  %s1 = inlined_call_operand.hbm [shape: f32[8,128], index: 1, kind: output, shape index: {}]
  %s2 = sld [smem:[#allocation0]]
  $region30: #{tpu_custom_call.1} parent=0
    _
  %s4 = ssub.s32 1, %s2
  %s5 = scalar_select 0, %s4, %s2
  $region1: #{tpu_custom_call.1} parent=0
    #allocation2 [shape = 'u8[8192]{0}', space=vmem, size = 0x2000, scoped, tag = 'input window, operand 0, single buffered']
    #allocation3 [shape = 's32[1]{0}', space=sflag, size = 0x4, scoped, tag = 'scoped memory for tpu_custom_call.1']
    #allocation4 [shape = 's32[1]{0}', space=sflag, size = 0x4, scoped, tag = 'scoped memory for tpu_custom_call.1']
    #allocation5 [shape = 'u8[4096]{0}', space=vmem, size = 0x1000, scoped, tag = 'output window, operand 0, single buffered']
    %6 = vsyncpa [#allocation3], 0
    %7 = vsyncpa [#allocation4], 0
    // Predicated region
    $region2: #{tpu_custom_call.1} parent=1 // pred_check
      _
    $region3: #{tpu_custom_call.1} parent=1 // pred_check_branch
      %9 = sbr.rel (0) target = $region5
    $region4: #{tpu_custom_call.1} parent=1 // pred_region
      %s10 = sadd.s32 0, 0
      %p11 = scmp.lt.s32.totalorder %s10, 0
      %s12 = scalar_select %p11, %s10, 0
      %s13 = smul.u32 2, %s12
      %s15 = ssub.s32 256, 256
      %16 = vsyncadd [#allocation3], %s15
      %s17 = smul.addr %s13, 128
      %s18 = scalar_lea.hbm %s0, %s17
      %s19 = sshll.u32 [#allocation2], 4
      %s20 = int_to_ptr.vmem [resolvable:$true] %s19
      %25 = dma.hbm_to_vmem [thread:$0]  %s18, 256, %s20, [#allocation3], 128, 128, 8
    $region5: #{tpu_custom_call.1} parent=1 // pred_fallthru
      _
    // Predicated region
    $region6: #{tpu_custom_call.1} parent=1 // pred_check
      _
    $region7: #{tpu_custom_call.1} parent=1 // pred_check_branch
      %27 = sbr.rel (0) target = $region9
    $region8: #{tpu_custom_call.1} parent=1 // pred_region
      %28 = dma.done [#allocation3], 256
    $region9: #{tpu_custom_call.1} parent=1 // pred_fallthru
      _
    %s29 = sadd.s32 0, 0
    %p30 = scmp.lt.s32.totalorder %s29, 0
    %s31 = scalar_select %p30, %s29, 0
    %s32 = smul.u32 2, %s31
    %p33 = scmp.eq.s32.totalorder 0, 0
    // Predicated region
    $region10: #{tpu_custom_call.1} parent=1 // pred_check
      %p34 = pneg %p33
    $region11: #{tpu_custom_call.1} parent=1 // pred_check_branch
      %36 = sbr.rel (%p34) target = $region13
    $region12: #{tpu_custom_call.1} parent=1 // pred_region
      %37 = vst [vmem:[#allocation5] sm:$0xff] 0.0
    $region13: #{tpu_custom_call.1} parent=1 // pred_fallthru
      _
    %s38 = sadd.s32 0, 0
    %s39 = smul.u32 %s38, 16
    %s40 = sadd.s32 %s39, 16
    %p41 = scmp.le.s32.totalorder %s40, 16
    // Predicated region
    $region14: #{tpu_custom_call.1} parent=1 // pred_check
      %p42 = pneg %p41
    $region15: #{tpu_custom_call.1} parent=1 // pred_check_branch
      %44 = sbr.rel (%p42) target = $region17
    $region16: #{tpu_custom_call.1} parent=1 // pred_region
      %v45 = vld [vmem:[#allocation5] sm:$0xff]
      %v46 = vld [vmem:[#allocation2] sm:$0xff]
      %v47 = vld [vmem:[#allocation2 + $0x8] sm:$0xff]
      %v48 = vsub.f32 0.0, %v46
      %v49 = vsub.f32 0.0, %v47
      %v50 = vmax.f32 %v48, 0.0
      %v51 = vmax.f32 %v49, 0.0
      %v52 = vsub.f32 %v46, 1.0
      %v53 = vsub.f32 %v47, 1.0
      %v54 = vmax.f32 %v52, 0.0
      %v55 = vmax.f32 %v53, 0.0
      %v56 = vmul.f32 %v54, 0.5
      %v57 = vmul.f32 %v55, 0.5
      %v58 = vadd.f32 %v50, %v56
      %v59 = vadd.f32 %v51, %v57
      %v60 = vadd.f32 %v58, %v59
      %v61 = vadd.f32 %v60, 0.0
      %v62 = vadd.f32 %v45, %v61
      %63 = vst [vmem:[#allocation5] sm:$0xff] %v62
    $region17: #{tpu_custom_call.1} parent=1 // pred_fallthru
      _
    %p64 = scmp.gt.s32.totalorder %s40, 16
    // Predicated region
    $region18: #{tpu_custom_call.1} parent=1 // pred_check
      %p65 = pneg %p64
    $region19: #{tpu_custom_call.1} parent=1 // pred_check_branch
      %67 = sbr.rel (%p65) target = $region21
    $region20: #{tpu_custom_call.1} parent=1 // pred_region
      %v68 = vld [vmem:[#allocation5] sm:$0xff]
      %s69 = sadd.s32 %s39, 0
      %v70 = vlaneseq
      %v71 = vshrl.u32 %v70, 7
      %v72 = vadd.s32 %v71, 8
      %v73 = vstv %s69
      %v74 = vadd.s32 %v73, %v71
      %v75 = vadd.s32 %v73, %v72
      %v76 = vld [vmem:[#allocation2] sm:$0xff]
      %v77 = vld [vmem:[#allocation2 + $0x8] sm:$0xff]
      %vm78 = vcmp.lt.s32.totalorder %v74, 16
      %vm79 = vcmp.lt.s32.totalorder %v75, 16
      %v80 = vsel %vm78, %v76, 0.0
      %v81 = vsel %vm79, %v77, 0.0
      %v82 = vsub.f32 0.0, %v80
      %v83 = vsub.f32 0.0, %v81
      %v84 = vmax.f32 %v82, 0.0
      %v85 = vmax.f32 %v83, 0.0
      %v86 = vsub.f32 %v80, 1.0
      %v87 = vsub.f32 %v81, 1.0
      %v88 = vmax.f32 %v86, 0.0
      %v89 = vmax.f32 %v87, 0.0
      %v90 = vmul.f32 %v88, 0.5
      %v91 = vmul.f32 %v89, 0.5
      %v92 = vadd.f32 %v84, %v90
      %v93 = vadd.f32 %v85, %v91
      %v94 = vadd.f32 %v92, %v93
      %v95 = vadd.f32 %v94, 0.0
      %v96 = vadd.f32 %v68, %v95
      %97 = vst [vmem:[#allocation5] sm:$0xff] %v96
    $region21: #{tpu_custom_call.1} parent=1 // pred_fallthru
      _
    // Predicated region
    $region22: #{tpu_custom_call.1} parent=1 // pred_check
      _
    $region23: #{tpu_custom_call.1} parent=1 // pred_check_branch
      %99 = sbr.rel (0) target = $region25
    $region24: #{tpu_custom_call.1} parent=1 // pred_region
      %s101 = ssub.s32 128, 128
      %102 = vsyncadd [#allocation4], %s101
      %s104 = sshll.u32 [#allocation5], 4
      %s105 = int_to_ptr.vmem [resolvable:$true] %s104
      %107 = dma.vmem_to_hbm [thread:$0]  %s105, 128, %s1, [#allocation4]
    $region25: #{tpu_custom_call.1} parent=1 // pred_fallthru
      _
    // Predicated region
    $region26: #{tpu_custom_call.1} parent=1 // pred_check
      _
    $region27: #{tpu_custom_call.1} parent=1 // pred_check_branch
      %109 = sbr.rel (0) target = $region29
    $region28: #{tpu_custom_call.1} parent=1 // pred_region
      %110 = dma.done [#allocation4], 128
    $region29: #{tpu_custom_call.1} parent=1 // pred_fallthru
      _
    %111 = vsyncpa [#allocation3], 1
    %112 = vsyncpa [#allocation4], 1

</llo_original>
